<compile_context>
chip_gen: v7x
topology: tpu7x:2x2x1
jax: 0.10.0
libtpu: 0.0.40
codegen_flags: <defaults>
</compile_context>

<pallas_src>
import math

import jax
import jax.numpy as jnp
from jax import lax
from jax.experimental import pallas as pl
from jax.experimental.pallas import tpu as pltpu


def _round_up(x, m):
    return (x + m - 1) // m * m


def _gelu_exact(x):
    # PyTorch nn.GELU() default = exact erf-based GELU (computed in f32).
    return 0.5 * x * (1.0 + lax.erf(x * (1.0 / math.sqrt(2.0))))


# -----------------------------------------------------------------------------
# Kernels
# -----------------------------------------------------------------------------
def _mlp_kernel_acc(x_ref, w1_ref, b1_ref, w2_ref, b2_ref, o_ref, acc_ref):
    """Hidden-dim reduction MLP step with a dedicated f32 accumulator scratch.

    Used when the output dtype is not f32 (e.g. bf16 outputs)."""
    k = pl.program_id(1)

    @pl.when(k == 0)
    def _():
        acc_ref[...] = jnp.zeros_like(acc_ref)

    x = x_ref[...]                                     # native dtype -> MXU
    h = jnp.dot(x, w1_ref[...], preferred_element_type=jnp.float32)
    h = _gelu_exact(h + b1_ref[...].astype(jnp.float32))
    # TODO(synk): dropout with drop=0.0 is identity; nonzero drop would need
    # pltpu.prng_seed + pltpu.stateful_bernoulli masking here.
    acc_ref[...] += jnp.dot(h.astype(x.dtype), w2_ref[...],
                            preferred_element_type=jnp.float32)

    @pl.when(k == pl.num_programs(1) - 1)
    def _():
        o_ref[...] = (acc_ref[...]
                      + b2_ref[...].astype(jnp.float32)).astype(o_ref.dtype)


def _mlp_kernel_f32_out(x_ref, w1_ref, b1_ref, w2_ref, b2_ref, o_ref):
    """Same reduction, but the resident f32 output tile IS the accumulator
    (saves tm x d_out f32 of VMEM; b2 is folded into the k==0 init)."""
    k = pl.program_id(1)

    @pl.when(k == 0)
    def _():
        o_ref[...] = jnp.broadcast_to(b2_ref[...].astype(jnp.float32),
                                      o_ref.shape)

    x = x_ref[...]
    h = jnp.dot(x, w1_ref[...], preferred_element_type=jnp.float32)
    h = _gelu_exact(h + b1_ref[...].astype(jnp.float32))
    o_ref[...] += jnp.dot(h.astype(x.dtype), w2_ref[...],
                          preferred_element_type=jnp.float32)


# -----------------------------------------------------------------------------
# Generation-aware tile selection
# -----------------------------------------------------------------------------
def _tpu_hw_info():
    """Return (VMEM bytes per core, #TensorCores sharing the parallel axis)."""
    vmem_bytes = 128 * 1024 * 1024
    num_tc = 1
    try:
        info = pltpu.get_tpu_info()
        vmem_bytes = int(getattr(info, "vmem_capacity_bytes", vmem_bytes))
    except Exception:
        pass
    try:
        kind = jax.devices()[0].device_kind.lower()
        # v4/v5p megacore and v7x expose 2 TensorCores behind one device.
        if ("v7" in kind) or ("v4" in kind) or ("v5p" in kind):
            num_tc = 2
    except Exception:
        pass
    return vmem_bytes, num_tc


def _choose_tk(d_hid, tk_max):
    """Pick the hidden tile: keep it deep (full MXU K) and minimize the zero
    padding of d_hid up to a multiple of tk (padding is exact but wasted)."""
    d128 = _round_up(d_hid, 128)
    tk = min(_round_up(max(tk_max, 128), 128), d128)
    best_tk, best_pad = tk, _round_up(d128, tk)
    c = tk - 128
    while c >= 256:                     # never fall below 256 just to divide
        padded = _round_up(d128, c)
        if padded < best_pad:
            best_tk, best_pad = c, padded
        c -= 128
    return best_tk, best_pad


def _fit_tiles(m, d_in_p, d_out_p, d_hid, in_dsize, out_dsize, use_acc,
               vmem_budget, num_tc, tm_max, tk_max):
    def fixed_bytes(tk):
        # double-buffered weight/bias tiles (do not scale with tm)
        return (2 * in_dsize * (d_in_p * tk + tk * d_out_p)
                + 2 * 4 * (tk + d_out_p))

    per_row = (2 * in_dsize * d_in_p + 2 * out_dsize * d_out_p
               + (4 * d_out_p if use_acc else 0))

    tk, d_hid_p = _choose_tk(d_hid, tk_max)
    # Shrink tk only if even a minimal (8-row) tile would not fit VMEM.
    while tk > 128 and fixed_bytes(tk) + 8 * per_row > vmem_budget:
        tk -= 128
        d_hid_p = _round_up(d_hid, tk)

    avail = max(vmem_budget - fixed_bytes(tk), 8 * per_row)
    tm = max(8, min(_round_up(max(tm_max, 8), 8), (avail // per_row) // 8 * 8))
    if num_tc > 1:
        # Keep >= num_tc tiles on the parallel M axis so every TensorCore
        # gets work (largest tm that still allows it).
        tm = min(tm, max(8, _round_up(-(-m // num_tc), 8)))
    tm = min(tm, _round_up(m, 8))
    m_p = _round_up(m, tm)
    footprint = fixed_bytes(tk) + per_row * tm
    return tm, tk, d_hid_p, m_p, footprint


# -----------------------------------------------------------------------------
# Wrapper
# -----------------------------------------------------------------------------
def mlp_forward(x, w1, b1, w2, b2, *, tm=1024, tk=512, compute_dtype=None):
    """fc2(GELU(fc1(x))) with dropout p=0.0.

    x : [..., d_in]; w1: [d_in, d_hid]; b1: [d_hid]; w2: [d_hid, d_out];
    b2: [d_out].  `tm`/`tk` are upper bounds; actual tiles are sized to the
    detected TPU generation (VMEM capacity, TensorCore count).
    `compute_dtype` (e.g. jnp.bfloat16) casts MXU operands; accumulation,
    biases and GELU stay f32 and the output keeps x.dtype.
    """
    orig_shape = x.shape
    d_in = orig_shape[-1]
    d_hid = w1.shape[1]
    d_out = w2.shape[1]
    assert w1.shape[0] == d_in and w2.shape[0] == d_hid
    assert b1.shape == (d_hid,) and b2.shape == (d_out,)

    out_dtype = x.dtype
    cdt = jnp.dtype(compute_dtype) if compute_dtype is not None else jnp.dtype(x.dtype)

    x2 = x.reshape(-1, d_in)
    m = x2.shape[0]

    d_in_p = _round_up(d_in, 128)
    d_out_p = _round_up(d_out, 128)

    in_dsize = cdt.itemsize
    out_dsize = jnp.dtype(out_dtype).itemsize
    use_acc = jnp.dtype(out_dtype) != jnp.dtype(jnp.float32)

    vmem_cap, num_tc = _tpu_hw_info()
    vmem_budget = int(vmem_cap * 0.75)

    tm_eff, tk_eff, d_hid_p, m_p, footprint = _fit_tiles(
        m, d_in_p, d_out_p, d_hid, in_dsize, out_dsize, use_acc,
        vmem_budget, num_tc, tm, tk)

    # --- Pad (zero padding is exact: GELU(0)=0) and, if requested, cast MXU
    #     operands.  Skipped when shapes/dtypes already match; for production,
    #     pre-pad / pre-cast parameters once at load time instead of per call.
    def pad2(a, rows, cols, dtype):
        if a.dtype != dtype:
            a = a.astype(dtype)
        pr, pc = rows - a.shape[0], cols - a.shape[1]
        if pr or pc:
            a = jnp.pad(a, ((0, pr), (0, pc)))
        return a

    x_p = pad2(x2, m_p, d_in_p, cdt)
    w1_p = pad2(w1, d_in_p, d_hid_p, cdt)
    w2_p = pad2(w2, d_hid_p, d_out_p, cdt)
    b1_p = pad2(b1.reshape(1, d_hid), 1, d_hid_p, jnp.float32)
    b2_p = pad2(b2.reshape(1, d_out), 1, d_out_p, jnp.float32)

    n_m = m_p // tm_eff
    n_k = d_hid_p // tk_eff
    grid = (n_m, n_k)

    # Generation-aware VMEM limit (never exceeds physical VMEM).
    vmem_limit = int(min(max(int(footprint * 1.25), 32 << 20),
                         int(vmem_cap * 0.9)))

    cost = pl.CostEstimate(
        flops=int(2 * m_p * (d_in_p * d_hid_p + d_hid_p * d_out_p)),
        transcendentals=int(m_p * d_hid_p),
        # weights/biases are re-streamed from HBM once per M tile.
        bytes_accessed=int(
            in_dsize * m_p * d_in_p
            + n_m * in_dsize * (d_in_p * d_hid_p + d_hid_p * d_out_p)
            + n_m * 4 * (d_hid_p + d_out_p)
            + out_dsize * m_p * d_out_p),
    )

    in_specs = [
        pl.BlockSpec((tm_eff, d_in_p), lambda i, k: (i, 0)),
        pl.BlockSpec((d_in_p, tk_eff), lambda i, k: (0, k)),
        pl.BlockSpec((1, tk_eff), lambda i, k: (0, k)),
        pl.BlockSpec((tk_eff, d_out_p), lambda i, k: (k, 0)),
        pl.BlockSpec((1, d_out_p), lambda i, k: (0, 0)),
    ]
    out_spec = pl.BlockSpec((tm_eff, d_out_p), lambda i, k: (i, 0))

    kernel = _mlp_kernel_acc if use_acc else _mlp_kernel_f32_out
    scratch = [pltpu.VMEM((tm_eff, d_out_p), jnp.float32)] if use_acc else []

    out = pl.pallas_call(
        kernel,
        out_shape=jax.ShapeDtypeStruct((m_p, d_out_p), out_dtype),
        grid_spec=pltpu.PrefetchScalarGridSpec(
            num_scalar_prefetch=0,
            grid=grid,
            in_specs=in_specs,
            out_specs=out_spec,
            scratch_shapes=scratch,
        ),
        compiler_params=pltpu.CompilerParams(
            dimension_semantics=("parallel", "arbitrary"),
            vmem_limit_bytes=vmem_limit,
        ),
        cost_estimate=cost,
    )(x_p, w1_p, b1_p, w2_p, b2_p)

    out = out[:m, :d_out]
    return out.reshape(*orig_shape[:-1], d_out)


# -----------------------------------------------------------------------------
# Reference + test harness
# -----------------------------------------------------------------------------
def mlp_reference(x, w1, b1, w2, b2):
    h = jnp.dot(x, w1) + b1
    h = jax.nn.gelu(h, approximate=False)
    return jnp.dot(h, w2) + b2


def _make_params(key, d_in, d_hid, d_out):
    kw1, kb1, kw2, kb2 = jax.random.split(key, 4)
    lim1 = 1.0 / math.sqrt(d_in)
    w1 = jax.random.uniform(kw1, (d_in, d_hid), minval=-lim1, maxval=lim1,
                            dtype=jnp.float32)
    b1 = jax.random.uniform(kb1, (d_hid,), minval=-lim1, maxval=lim1,
                            dtype=jnp.float32)
    lim2 = 1.0 / math.sqrt(d_hid)
    w2 = jax.random.uniform(kw2, (d_hid, d_out), minval=-lim2, maxval=lim2,
                            dtype=jnp.float32)
    b2 = jax.random.uniform(kb2, (d_out,), minval=-lim2, maxval=lim2,
                            dtype=jnp.float32)
    return w1, b1, w2, b2


if __name__ == "__main__":
    key = jax.random.PRNGKey(0)
    k1, k2, k3, k4, k5, k6 = jax.random.split(key, 6)

    # Test 1: small transformer-MLP-like shapes, f32 (single hidden tile,
    # output-tile-as-accumulator path).
    batch, seq, d_in, d_hid = 2, 8, 32, 64
    x = jax.random.normal(k1, (batch, seq, d_in), dtype=jnp.float32)
    w1, b1, w2, b2 = _make_params(k2, d_in, d_hid, d_in)
    y = jax.block_until_ready(mlp_forward(x, w1, b1, w2, b2))
    y_ref = mlp_reference(x, w1, b1, w2, b2)
    assert y.shape == (batch, seq, d_in)
    assert jnp.allclose(y, y_ref, atol=2e-5, rtol=2e-5), "mismatch (test 1)"

    # Test 2: ragged M + multi-step hidden reduction (exercises padding,
    # multi-k accumulation, and b2-added-once correctness), f32.
    batch2, seq2, d_in2, d_hid2, d_out2 = 2, 37, 48, 320, 40
    x2 = jax.random.normal(k3, (batch2, seq2, d_in2), dtype=jnp.float32)
    w1b, b1b, w2b, b2b = _make_params(k4, d_in2, d_hid2, d_out2)
    y2 = jax.block_until_ready(
        mlp_forward(x2, w1b, b1b, w2b, b2b, tm=64, tk=128))
    y2_ref = mlp_reference(x2, w1b, b1b, w2b, b2b)
    assert y2.shape == (batch2, seq2, d_out2)
    assert jnp.allclose(y2, y2_ref, atol=1e-4, rtol=1e-4), "mismatch (test 2)"

    # Test 3: bf16 end-to-end (exercises the f32-scratch accumulator kernel
    # and the native-bf16 MXU path), loose tolerance vs f32 reference.
    batch3, seq3, d_in3, d_hid3, d_out3 = 2, 16, 64, 256, 48
    x3 = jax.random.normal(k5, (batch3, seq3, d_in3),
                           dtype=jnp.float32).astype(jnp.bfloat16)
    w1c, b1c, w2c, b2c = _make_params(k6, d_in3, d_hid3, d_out3)
    w1c, b1c, w2c, b2c = (a.astype(jnp.bfloat16) for a in (w1c, b1c, w2c, b2c))
    y3 = jax.block_until_ready(mlp_forward(x3, w1c, b1c, w2c, b2c, tk=128))
    y3_ref = mlp_reference(x3.astype(jnp.float32), w1c.astype(jnp.float32),
                           b1c.astype(jnp.float32), w2c.astype(jnp.float32),
                           b2c.astype(jnp.float32))
    assert y3.shape == (batch3, seq3, d_out3) and y3.dtype == jnp.bfloat16
    assert jnp.allclose(y3.astype(jnp.float32), y3_ref,
                        atol=5e-2, rtol=5e-2), "mismatch (test 3)"

    print("KERNEL_OK")
</pallas_src>

<mosaic_0001>
module attributes {stable_mosaic.version = 11 : i64} {
  func.func @_mlp_kernel_f32_out(%arg0: i32, %arg1: i32, %arg2: memref<16x128xf32, #tpu.memory_space<vmem>>, %arg3: memref<128x128xf32, #tpu.memory_space<vmem>>, %arg4: memref<1x128xf32, #tpu.memory_space<vmem>>, %arg5: memref<128x128xf32, #tpu.memory_space<vmem>>, %arg6: memref<1x128xf32, #tpu.memory_space<vmem>>, %arg7: memref<16x128xf32, #tpu.memory_space<vmem>>) attributes {dimension_semantics = [#tpu.dimension_semantics<parallel>, #tpu.dimension_semantics<arbitrary>], iteration_bounds = array<i64: 1, 1>, scalar_prefetch = 0 : i64, scratch_operands = 0 : i64, tpu.core_type = #tpu.core_type<tc>, window_params = [{transform_indices = @transform_0, window_bounds = array<i64: 16, 128>}, {transform_indices = @transform_1, window_bounds = array<i64: 128, 128>}, {transform_indices = @transform_2, window_bounds = array<i64: 1, 128>}, {transform_indices = @transform_3, window_bounds = array<i64: 128, 128>}, {pipeline_mode = #tpu.pipeline_mode<synchronous>, transform_indices = @transform_4, window_bounds = array<i64: 1, 128>}, {transform_indices = @transform_5, window_bounds = array<i64: 16, 128>}]} {
    %c0_i32 = arith.constant 0 : i32
    %0 = arith.cmpi eq, %arg1, %c0_i32 : i32
    %1 = arith.extui %0 : i1 to i32
    %c0_i32_0 = arith.constant 0 : i32
    %2 = arith.cmpi ne, %1, %c0_i32_0 : i32
    scf.if %2 {
      %c0_16 = arith.constant 0 : index
      %c0_17 = arith.constant 0 : index
      %22 = vector.load %arg6[%c0_16, %c0_17] : memref<1x128xf32, #tpu.memory_space<vmem>>, vector<1x128xf32>
      %23 = vector.shape_cast %22 : vector<1x128xf32> to vector<1x128xf32>
      %24 = vector.broadcast %23 : vector<1x128xf32> to vector<16x128xf32>
      %c0_18 = arith.constant 0 : index
      %c0_19 = arith.constant 0 : index
      %25 = vector.load %arg7[%c0_18, %c0_19] : memref<16x128xf32, #tpu.memory_space<vmem>>, vector<16x128xf32>
      tpu.vector_store %arg7[%c0_18, %c0_19], %24 {strides = array<i32>} : memref<16x128xf32, #tpu.memory_space<vmem>>, vector<16x128xf32>,
    } else {
    }
    %c0 = arith.constant 0 : index
    %c0_1 = arith.constant 0 : index
    %3 = vector.load %arg2[%c0, %c0_1] : memref<16x128xf32, #tpu.memory_space<vmem>>, vector<16x128xf32>
    %c0_2 = arith.constant 0 : index
    %c0_3 = arith.constant 0 : index
    %4 = vector.load %arg3[%c0_2, %c0_3] : memref<128x128xf32, #tpu.memory_space<vmem>>, vector<128x128xf32>
    %cst = arith.constant dense<0.000000e+00> : vector<16x128xf32>
    %5 = tpu.matmul %3, %4, %cst {dimension_numbers = #tpu.dot_dimension_numbers<[1], [0], [0], [1], [0, 0, 1, 1], [], []>} : vector<16x128xf32>, vector<128x128xf32>, vector<16x128xf32> -> vector<16x128xf32>
    %c0_4 = arith.constant 0 : index
    %c0_5 = arith.constant 0 : index
    %6 = vector.load %arg4[%c0_4, %c0_5] : memref<1x128xf32, #tpu.memory_space<vmem>>, vector<1x128xf32>
    %7 = vector.broadcast %6 : vector<1x128xf32> to vector<16x128xf32>
    %8 = arith.addf %5, %7 : vector<16x128xf32>
    %cst_6 = arith.constant 5.000000e-01 : f32
    %9 = vector.broadcast %cst_6 : f32 to vector<16x128xf32>
    %10 = arith.mulf %9, %8 : vector<16x128xf32>
    %cst_7 = arith.constant 0.707106769 : f32
    %11 = vector.broadcast %cst_7 : f32 to vector<16x128xf32>
    %12 = arith.mulf %8, %11 : vector<16x128xf32>
    %13 = math.erf %12 : vector<16x128xf32>
    %cst_8 = arith.constant 1.000000e+00 : f32
    %14 = vector.broadcast %cst_8 : f32 to vector<16x128xf32>
    %15 = arith.addf %14, %13 : vector<16x128xf32>
    %16 = arith.mulf %10, %15 : vector<16x128xf32>
    %c0_9 = arith.constant 0 : index
    %c0_10 = arith.constant 0 : index
    %17 = vector.load %arg7[%c0_9, %c0_10] : memref<16x128xf32, #tpu.memory_space<vmem>>, vector<16x128xf32>
    %c0_11 = arith.constant 0 : index
    %c0_12 = arith.constant 0 : index
    %18 = vector.load %arg5[%c0_11, %c0_12] : memref<128x128xf32, #tpu.memory_space<vmem>>, vector<128x128xf32>
    %cst_13 = arith.constant dense<0.000000e+00> : vector<16x128xf32>
    %19 = tpu.matmul %16, %18, %cst_13 {dimension_numbers = #tpu.dot_dimension_numbers<[1], [0], [0], [1], [0, 0, 1, 1], [], []>} : vector<16x128xf32>, vector<128x128xf32>, vector<16x128xf32> -> vector<16x128xf32>
    %20 = arith.addf %17, %19 : vector<16x128xf32>
    %c0_14 = arith.constant 0 : index
    %c0_15 = arith.constant 0 : index
    %21 = vector.load %arg7[%c0_14, %c0_15] : memref<16x128xf32, #tpu.memory_space<vmem>>, vector<16x128xf32>
    tpu.vector_store %arg7[%c0_14, %c0_15], %20 {strides = array<i32>} : memref<16x128xf32, #tpu.memory_space<vmem>>, vector<16x128xf32>,
    return
  }
  func.func @transform_0(%arg0: i32, %arg1: i32) -> (i32, i32) {
    %c0_i32 = arith.constant 0 : i32
    %c0_i32_0 = arith.constant 0 : i32
    return %arg0, %c0_i32 : i32, i32
  }
  func.func @transform_1(%arg0: i32, %arg1: i32) -> (i32, i32) {
    %c0_i32 = arith.constant 0 : i32
    %c0_i32_0 = arith.constant 0 : i32
    return %c0_i32, %arg1 : i32, i32
  }
  func.func @transform_2(%arg0: i32, %arg1: i32) -> (i32, i32) {
    %c0_i32 = arith.constant 0 : i32
    %c0_i32_0 = arith.constant 0 : i32
    return %c0_i32, %arg1 : i32, i32
  }
  func.func @transform_3(%arg0: i32, %arg1: i32) -> (i32, i32) {
    %c0_i32 = arith.constant 0 : i32
    %c0_i32_0 = arith.constant 0 : i32
    return %arg1, %c0_i32 : i32, i32
  }
  func.func @transform_4(%arg0: i32, %arg1: i32) -> (i32, i32) {
    %c0_i32 = arith.constant 0 : i32
    %c0_i32_0 = arith.constant 0 : i32
    %c0_i32_1 = arith.constant 0 : i32
    return %c0_i32, %c0_i32_0 : i32, i32
  }
  func.func @transform_5(%arg0: i32, %arg1: i32) -> (i32, i32) {
    %c0_i32 = arith.constant 0 : i32
    %c0_i32_0 = arith.constant 0 : i32
    return %arg0, %c0_i32 : i32, i32
  }
}

</mosaic_0001>

<llo_original>
// kernel: tpu_custom_call.1
$region0: #{tpu_custom_call.1}
  #allocation0 [shape = 'u32[]', space=smem, size = 0x4, offset = 0x4, fixed_abs, tag = 'smem constant byte address 0x4 - core index']
  #allocation1 [shape = 'u32[144,128]{1,0:T(1,128)}', space=vmem, size = 0x12000, scoped, tag = 'internal scratch']
  %s0 = inlined_call_operand.hbm [shape: f32[16,128], index: 0, kind: input, shape index: {}]
  %s1 = inlined_call_operand.hbm [shape: f32[128,128], index: 1, kind: input, shape index: {}]
  %s2 = inlined_call_operand.vmem [shape: f32[1,128], index: 2, kind: input, shape index: {}]
  %s3 = inlined_call_operand.hbm [shape: f32[128,128], index: 3, kind: input, shape index: {}]
  %s4 = inlined_call_operand.vmem [shape: f32[1,128], index: 4, kind: input, shape index: {}]
  %s5 = inlined_call_operand.hbm [shape: f32[16,128], index: 5, kind: output, shape index: {}]
  %s6 = sld [smem:[#allocation0]]
  $region46: #{tpu_custom_call.1} parent=0
    _
  %s8 = ssub.s32 1, %s6
  %s9 = scalar_select 0, %s8, %s6
  $region1: #{tpu_custom_call.1} parent=0
    #allocation2 [shape = 'u8[8192]{0}', space=vmem, size = 0x2000, scoped, tag = 'input window, operand 0, single buffered']
    #allocation3 [shape = 's32[1]{0}', space=sflag, size = 0x4, scoped, tag = 'scoped memory for tpu_custom_call.1']
    #allocation4 [shape = 's32[1]{0}', space=sflag, size = 0x4, scoped, tag = 'scoped memory for tpu_custom_call.1']
    #allocation5 [shape = 'u8[65536]{0}', space=vmem, size = 0x10000, scoped, tag = 'input window, operand 1, single buffered']
    #allocation6 [shape = 's32[1]{0}', space=sflag, size = 0x4, scoped, tag = 'scoped memory for tpu_custom_call.1']
    #allocation7 [shape = 'u8[65536]{0}', space=vmem, size = 0x10000, scoped, tag = 'input window, operand 3, single buffered']
    #allocation8 [shape = 'u8[8192]{0}', space=vmem, size = 0x2000, scoped, tag = 'output window, operand 0, single buffered']
    %10 = vsyncpa [#allocation3], 0
    %11 = vsyncpa [#allocation6], 0
    %12 = vsyncpa [#allocation4], 0
    // Predicated region
    $region2: #{tpu_custom_call.1} parent=1 // pred_check
      _
    $region3: #{tpu_custom_call.1} parent=1 // pred_check_branch
      %14 = sbr.rel (0) target = $region5
    $region4: #{tpu_custom_call.1} parent=1 // pred_region
      %s16 = ssub.s32 256, 256
      %17 = vsyncadd [#allocation3], %s16
      %s18 = sshll.u32 [#allocation2], 4
      %s19 = int_to_ptr.vmem [resolvable:$true] %s18
      %24 = dma.hbm_to_vmem [thread:$0]  %s0, 256, %s19, [#allocation3], 128, 128, 8
    $region5: #{tpu_custom_call.1} parent=1 // pred_fallthru
      _
    // Predicated region
    $region6: #{tpu_custom_call.1} parent=1 // pred_check
      _
    $region7: #{tpu_custom_call.1} parent=1 // pred_check_branch
      %26 = sbr.rel (0) target = $region9
    $region8: #{tpu_custom_call.1} parent=1 // pred_region
      %s28 = ssub.s32 2048, 2048
      %29 = vsyncadd [#allocation6], %s28
      %s30 = sshll.u32 [#allocation5], 4
      %s31 = int_to_ptr.vmem [resolvable:$true] %s30
      %36 = dma.hbm_to_vmem [thread:$0]  %s1, 2048, %s31, [#allocation6], 128, 128, 8
    $region9: #{tpu_custom_call.1} parent=1 // pred_fallthru
      _
    // Predicated region
    $region10: #{tpu_custom_call.1} parent=1 // pred_check
      _
    $region11: #{tpu_custom_call.1} parent=1 // pred_check_branch
      %38 = sbr.rel (0) target = $region13
    $region12: #{tpu_custom_call.1} parent=1 // pred_region
      _
    $region13: #{tpu_custom_call.1} parent=1 // pred_fallthru
      _
    // Predicated region
    $region14: #{tpu_custom_call.1} parent=1 // pred_check
      _
    $region15: #{tpu_custom_call.1} parent=1 // pred_check_branch
      %40 = sbr.rel (0) target = $region17
    $region16: #{tpu_custom_call.1} parent=1 // pred_region
      %s42 = ssub.s32 2048, 2048
      %43 = vsyncadd [#allocation6], %s42
      %s44 = sshll.u32 [#allocation7], 4
      %s45 = int_to_ptr.vmem [resolvable:$true] %s44
      %50 = dma.hbm_to_vmem [thread:$0]  %s3, 2048, %s45, [#allocation6], 128, 128, 8
    $region17: #{tpu_custom_call.1} parent=1 // pred_fallthru
      _
    // Predicated region
    $region18: #{tpu_custom_call.1} parent=1 // pred_check
      _
    $region19: #{tpu_custom_call.1} parent=1 // pred_check_branch
      %52 = sbr.rel (0) target = $region21
    $region20: #{tpu_custom_call.1} parent=1 // pred_region
      _
    $region21: #{tpu_custom_call.1} parent=1 // pred_fallthru
      _
    // Predicated region
    $region22: #{tpu_custom_call.1} parent=1 // pred_check
      _
    $region23: #{tpu_custom_call.1} parent=1 // pred_check_branch
      %54 = sbr.rel (0) target = $region25
    $region24: #{tpu_custom_call.1} parent=1 // pred_region
      %55 = dma.done [#allocation3], 256
    $region25: #{tpu_custom_call.1} parent=1 // pred_fallthru
      _
    // Predicated region
    $region26: #{tpu_custom_call.1} parent=1 // pred_check
      _
    $region27: #{tpu_custom_call.1} parent=1 // pred_check_branch
      %57 = sbr.rel (0) target = $region29
    $region28: #{tpu_custom_call.1} parent=1 // pred_region
      %58 = dma.done [#allocation6], 2048
    $region29: #{tpu_custom_call.1} parent=1 // pred_fallthru
      _
    // Predicated region
    $region30: #{tpu_custom_call.1} parent=1 // pred_check
      _
    $region31: #{tpu_custom_call.1} parent=1 // pred_check_branch
      %60 = sbr.rel (0) target = $region33
    $region32: #{tpu_custom_call.1} parent=1 // pred_region
      %61 = dma.done [#allocation6], 2048
    $region33: #{tpu_custom_call.1} parent=1 // pred_fallthru
      _
    %p62 = scmp.eq.s32.totalorder 0, 0
    // Predicated region
    $region34: #{tpu_custom_call.1} parent=1 // pred_check
      %p63 = pneg %p62
    $region35: #{tpu_custom_call.1} parent=1 // pred_check_branch
      %65 = sbr.rel (%p63) target = $region37
    $region36: #{tpu_custom_call.1} parent=1 // pred_region
      %v66 = vld [vmem:[%s4] sm:$0x1]
      %v68 = vlaneseq
      %v69 = vshrl.u32 %v68, 7
      %v70 = vsub.s32 0, %v69
      %v71 = vrot.slane %v66, %v70
      %73 = vst [vmem:[#allocation8] sm:$0xff] %v71
      %74 = vst [vmem:[#allocation8 + $0x8] sm:$0xff] %v71
    $region37: #{tpu_custom_call.1} parent=1 // pred_fallthru
      _
    %v75 = vld [vmem:[#allocation2] sm:$0xff]
    %v76 = vld [vmem:[#allocation2 + $0x8] sm:$0xff]
    %v77 = vld [vmem:[#allocation5] sm:$0xff]
    %v78 = vld [vmem:[#allocation5 + $0x8] sm:$0xff]
    %v79 = vld [vmem:[#allocation5 + $0x10] sm:$0xff]
    %v80 = vld [vmem:[#allocation5 + $0x18] sm:$0xff]
    %v81 = vld [vmem:[#allocation5 + $0x20] sm:$0xff]
    %v82 = vld [vmem:[#allocation5 + $0x28] sm:$0xff]
    %v83 = vld [vmem:[#allocation5 + $0x30] sm:$0xff]
    %v84 = vld [vmem:[#allocation5 + $0x38] sm:$0xff]
    %v85 = vld [vmem:[#allocation5 + $0x40] sm:$0xff]
    %v86 = vld [vmem:[#allocation5 + $0x48] sm:$0xff]
    %v87 = vld [vmem:[#allocation5 + $0x50] sm:$0xff]
    %v88 = vld [vmem:[#allocation5 + $0x58] sm:$0xff]
    %v89 = vld [vmem:[#allocation5 + $0x60] sm:$0xff]
    %v90 = vld [vmem:[#allocation5 + $0x68] sm:$0xff]
    %v91 = vld [vmem:[#allocation5 + $0x70] sm:$0xff]
    %v92 = vld [vmem:[#allocation5 + $0x78] sm:$0xff]
    %v93 = vld [vmem:[%s2] sm:$0x1]
    %v95 = vlaneseq
    %v96 = vshrl.u32 %v95, 7
    %v97 = vsub.s32 0, %v96
    %v98 = vrot.slane %v93, %v97
    %100 = vmatprep.subr.mxu0 0.0
    %101 = vmatpush1.msra.mxu0 %v77
    %102 = vmatprep.subr.mxu0 0.0
    %103 = vmatpush1.msra.mxu0 %v78
    %104 = vmatprep.subr.mxu0 0.0
    %105 = vmatpush1.msra.mxu0 %v79
    %106 = vmatprep.subr.mxu0 0.0
    %107 = vmatpush1.msra.mxu0 %v80
    %108 = vmatprep.subr.mxu0 0.0
    %109 = vmatpush1.msra.mxu0 %v81
    %110 = vmatprep.subr.mxu0 0.0
    %111 = vmatpush1.msra.mxu0 %v82
    %112 = vmatprep.subr.mxu0 0.0
    %113 = vmatpush1.msra.mxu0 %v83
    %114 = vmatprep.subr.mxu0 0.0
    %115 = vmatpush1.msra.mxu0 %v84
    %116 = vmatprep.subr.mxu0 0.0
    %117 = vmatpush1.msra.mxu0 %v85
    %118 = vmatprep.subr.mxu0 0.0
    %119 = vmatpush1.msra.mxu0 %v86
    %120 = vmatprep.subr.mxu0 0.0
    %121 = vmatpush1.msra.mxu0 %v87
    %122 = vmatprep.subr.mxu0 0.0
    %123 = vmatpush1.msra.mxu0 %v88
    %124 = vmatprep.subr.mxu0 0.0
    %125 = vmatpush1.msra.mxu0 %v89
    %126 = vmatprep.subr.mxu0 0.0
    %127 = vmatpush1.msra.mxu0 %v90
    %128 = vmatprep.subr.mxu0 0.0
    %129 = vmatpush1.msra.mxu0 %v91
    %130 = vmatprep.subr.mxu0 0.0
    %131 = vmatpush1.msra.mxu0 %v92
    %132 = vmatprep.subr.mxu0 0.0
    %133 = vmatpush1.msra.mxu0 0.0
    %134 = vmatprep.subr.mxu0 0.0
    %135 = vmatpush1.msra.mxu0 0.0
    %136 = vmatprep.subr.mxu0 0.0
    %137 = vmatpush1.msra.mxu0 0.0
    %138 = vmatprep.subr.mxu0 0.0
    %139 = vmatpush1.msra.mxu0 0.0
    %140 = vmatprep.subr.mxu0 0.0
    %141 = vmatpush1.msra.mxu0 0.0
    %142 = vmatprep.subr.mxu0 0.0
    %143 = vmatpush1.msra.mxu0 0.0
    %144 = vmatprep.subr.mxu0 0.0
    %145 = vmatpush1.msra.mxu0 0.0
    %146 = vmatprep.subr.mxu0 0.0
    %147 = vmatpush1.msra.mxu0 0.0
    %148 = vmatprep.subr.mxu0 0.0
    %149 = vmatpush1.msra.mxu0 0.0
    %150 = vmatprep.subr.mxu0 0.0
    %151 = vmatpush1.msra.mxu0 0.0
    %152 = vmatprep.subr.mxu0 0.0
    %153 = vmatpush1.msra.mxu0 0.0
    %154 = vmatprep.subr.mxu0 0.0
    %155 = vmatpush1.msra.mxu0 0.0
    %156 = vmatprep.subr.mxu0 0.0
    %157 = vmatpush1.msra.mxu0 0.0
    %158 = vmatprep.subr.mxu0 0.0
    %159 = vmatpush1.msra.mxu0 0.0
    %160 = vmatprep.subr.mxu0 0.0
    %161 = vmatpush1.msra.mxu0 0.0
    %162 = vmatprep.subr.mxu0 0.0
    %163 = vmatpush1.msra.mxu0 0.0
    %164 = vmatprep.mubr.f32.mxu0 0.0
    %165 = vmatmul.mubr.f32.gmra.mrb[0].mxu0 %v75
    %v166 = vpop.f32.mrb[0].mxu0
    %v167 = vadd.f32 %v98, %v166
    %v168 = vpop.f32.mrb[0].mxu0
    %169 = vmatprep.mubr.f32.mxu0 0.0
    %170 = vmatmul.mubr.f32.gmra.mrb[0].mxu0 %v76
    %v171 = vpop.f32.mrb[0].mxu0
    %v172 = vadd.f32 %v98, %v171
    %v173 = vpop.f32.mrb[0].mxu0
    %174 = vdwg.mxu0
    %v175 = vmul.f32 %v167, 0.5
    %v176 = vmul.f32 %v172, 0.5
    %v177 = vmul.f32 %v167, 0.70710677
    %v178 = vmul.f32 %v172, 0.70710677
    %v179 = verf.f32.pop %v177
    %v180 = verf.f32.pop %v178
    %v181 = vadd.f32 %v179, 1.0
    %v182 = vadd.f32 %v180, 1.0
    %v183 = vmul.f32 %v175, %v181
    %v184 = vmul.f32 %v176, %v182
    %v185 = vld [vmem:[#allocation8] sm:$0xff]
    %v186 = vld [vmem:[#allocation8 + $0x8] sm:$0xff]
    %v187 = vld [vmem:[#allocation7] sm:$0xff]
    %v188 = vld [vmem:[#allocation7 + $0x8] sm:$0xff]
    %v189 = vld [vmem:[#allocation7 + $0x10] sm:$0xff]
    %v190 = vld [vmem:[#allocation7 + $0x18] sm:$0xff]
    %v191 = vld [vmem:[#allocation7 + $0x20] sm:$0xff]
    %v192 = vld [vmem:[#allocation7 + $0x28] sm:$0xff]
    %v193 = vld [vmem:[#allocation7 + $0x30] sm:$0xff]
    %v194 = vld [vmem:[#allocation7 + $0x38] sm:$0xff]
    %v195 = vld [vmem:[#allocation7 + $0x40] sm:$0xff]
    %v196 = vld [vmem:[#allocation7 + $0x48] sm:$0xff]
    %v197 = vld [vmem:[#allocation7 + $0x50] sm:$0xff]
    %v198 = vld [vmem:[#allocation7 + $0x58] sm:$0xff]
    %v199 = vld [vmem:[#allocation7 + $0x60] sm:$0xff]
    %v200 = vld [vmem:[#allocation7 + $0x68] sm:$0xff]
    %v201 = vld [vmem:[#allocation7 + $0x70] sm:$0xff]
    %v202 = vld [vmem:[#allocation7 + $0x78] sm:$0xff]
    %203 = vmatprep.subr.mxu0 0.0
    %204 = vmatpush1.msra.mxu0 %v187
    %205 = vmatprep.subr.mxu0 0.0
    %206 = vmatpush1.msra.mxu0 %v188
    %207 = vmatprep.subr.mxu0 0.0
    %208 = vmatpush1.msra.mxu0 %v189
    %209 = vmatprep.subr.mxu0 0.0
    %210 = vmatpush1.msra.mxu0 %v190
    %211 = vmatprep.subr.mxu0 0.0
    %212 = vmatpush1.msra.mxu0 %v191
    %213 = vmatprep.subr.mxu0 0.0
    %214 = vmatpush1.msra.mxu0 %v192
    %215 = vmatprep.subr.mxu0 0.0
    %216 = vmatpush1.msra.mxu0 %v193
    %217 = vmatprep.subr.mxu0 0.0
    %218 = vmatpush1.msra.mxu0 %v194
    %219 = vmatprep.subr.mxu0 0.0
    %220 = vmatpush1.msra.mxu0 %v195
    %221 = vmatprep.subr.mxu0 0.0
    %222 = vmatpush1.msra.mxu0 %v196
    %223 = vmatprep.subr.mxu0 0.0
    %224 = vmatpush1.msra.mxu0 %v197
    %225 = vmatprep.subr.mxu0 0.0
    %226 = vmatpush1.msra.mxu0 %v198
    %227 = vmatprep.subr.mxu0 0.0
    %228 = vmatpush1.msra.mxu0 %v199
    %229 = vmatprep.subr.mxu0 0.0
    %230 = vmatpush1.msra.mxu0 %v200
    %231 = vmatprep.subr.mxu0 0.0
    %232 = vmatpush1.msra.mxu0 %v201
    %233 = vmatprep.subr.mxu0 0.0
    %234 = vmatpush1.msra.mxu0 %v202
    %235 = vmatprep.subr.mxu0 0.0
    %236 = vmatpush1.msra.mxu0 0.0
    %237 = vmatprep.subr.mxu0 0.0
    %238 = vmatpush1.msra.mxu0 0.0
    %239 = vmatprep.subr.mxu0 0.0
    %240 = vmatpush1.msra.mxu0 0.0
    %241 = vmatprep.subr.mxu0 0.0
    %242 = vmatpush1.msra.mxu0 0.0
    %243 = vmatprep.subr.mxu0 0.0
    %244 = vmatpush1.msra.mxu0 0.0
    %245 = vmatprep.subr.mxu0 0.0
    %246 = vmatpush1.msra.mxu0 0.0
    %247 = vmatprep.subr.mxu0 0.0
    %248 = vmatpush1.msra.mxu0 0.0
    %249 = vmatprep.subr.mxu0 0.0
    %250 = vmatpush1.msra.mxu0 0.0
    %251 = vmatprep.subr.mxu0 0.0
    %252 = vmatpush1.msra.mxu0 0.0
    %253 = vmatprep.subr.mxu0 0.0
    %254 = vmatpush1.msra.mxu0 0.0
    %255 = vmatprep.subr.mxu0 0.0
    %256 = vmatpush1.msra.mxu0 0.0
    %257 = vmatprep.subr.mxu0 0.0
    %258 = vmatpush1.msra.mxu0 0.0
    %259 = vmatprep.subr.mxu0 0.0
    %260 = vmatpush1.msra.mxu0 0.0
    %261 = vmatprep.subr.mxu0 0.0
    %262 = vmatpush1.msra.mxu0 0.0
    %263 = vmatprep.subr.mxu0 0.0
    %264 = vmatpush1.msra.mxu0 0.0
    %265 = vmatprep.subr.mxu0 0.0
    %266 = vmatpush1.msra.mxu0 0.0
    %267 = vmatprep.mubr.f32.mxu0 0.0
    %268 = vmatmul.mubr.f32.gmra.mrb[0].mxu0 %v183
    %v269 = vpop.f32.mrb[0].mxu0
    %v270 = vadd.f32 0.0, %v269
    %v271 = vpop.f32.mrb[0].mxu0
    %272 = vmatprep.mubr.f32.mxu0 0.0
    %273 = vmatmul.mubr.f32.gmra.mrb[0].mxu0 %v184
    %v274 = vpop.f32.mrb[0].mxu0
    %v275 = vadd.f32 0.0, %v274
    %v276 = vpop.f32.mrb[0].mxu0
    %277 = vdwg.mxu0
    %v278 = vadd.f32 %v185, %v270
    %v279 = vadd.f32 %v186, %v275
    %280 = vst [vmem:[#allocation8] sm:$0xff] %v278
    %281 = vst [vmem:[#allocation8 + $0x8] sm:$0xff] %v279
    // Predicated region
    $region38: #{tpu_custom_call.1} parent=1 // pred_check
      _
    $region39: #{tpu_custom_call.1} parent=1 // pred_check_branch
      %283 = sbr.rel (0) target = $region41
    $region40: #{tpu_custom_call.1} parent=1 // pred_region
      %s285 = ssub.s32 256, 256
      %286 = vsyncadd [#allocation4], %s285
      %s287 = sshll.u32 [#allocation8], 4
      %s288 = int_to_ptr.vmem [resolvable:$true] %s287
      %293 = dma.vmem_to_hbm [thread:$0]  %s288, 256, %s5, [#allocation4], 128, 128, 8
    $region41: #{tpu_custom_call.1} parent=1 // pred_fallthru
      _
    // Predicated region
    $region42: #{tpu_custom_call.1} parent=1 // pred_check
      _
    $region43: #{tpu_custom_call.1} parent=1 // pred_check_branch
      %295 = sbr.rel (0) target = $region45
    $region44: #{tpu_custom_call.1} parent=1 // pred_region
      %296 = dma.done [#allocation4], 256
    $region45: #{tpu_custom_call.1} parent=1 // pred_fallthru
      _
    %297 = vsyncpa [#allocation3], 1
    %298 = vsyncpa [#allocation6], 1
    %299 = vsyncpa [#allocation4], 1

</llo_original>
